<compile_context>
chip_gen: v5e
topology: v5e:2x2
jax: 0.10.0
libtpu: 0.0.40
codegen_flags: <defaults>
</compile_context>

<pallas_src>
import functools

import jax
import jax.numpy as jnp
from jax import lax
from jax.experimental import pallas as pl
from jax.experimental.pallas import tpu as pltpu


def _chunk_hits(x, t_masked, col_iota, diag, vocab):
    """Correct-prediction count for one sub-chunk of rows.

    x        : (rows, V)     logits slice, native dtype
    t_masked : (1, chunk)    int32 targets, lane s <-> local row s, -1 if invalid
    col_iota : (rows, V)     int32 class indices (hoisted constant)
    diag     : (rows, chunk) bool, diag[r, s] = (r == s) (hoisted constant)
    """
    # First-occurrence argmax over the class (lane) axis, in native dtype.
    row_max = jnp.max(x, axis=-1, keepdims=True)                 # (rows, 1)
    cand = jnp.where(x == row_max, col_iota, vocab)              # (rows, V) i32
    pred = jnp.min(cand, axis=-1, keepdims=True)                 # (rows, 1) i32

    # Targets arrive lane-major, pred is sublane-major.  Combine them through a
    # small (rows, chunk) diagonal select instead of a degenerate-shape
    # transpose: hit[r, s] is true only when s == r and pred_r == t_r.
    hit = (pred == t_masked) & diag                              # (rows, chunk)
    return jnp.sum(jnp.where(hit, 1, 0))


def _accuracy_kernel(logits_ref, targets_ref, out_ref, *, n_rows, chunk):
    # logits_ref : (row_tile, V)            native-dtype VMEM tile
    # targets_ref: (row_tile/chunk, chunk)  int32 VMEM tile (lane-major packing)
    # out_ref    : (1, 1)                   int32 SMEM slot -- this block's hits
    i = pl.program_id(0)
    rows_per_block, vocab = logits_ref.shape
    base = i * rows_per_block

    n_full = rows_per_block // chunk
    rem = rows_per_block % chunk

    # Loop-invariant constants, hoisted out of the inner loop.
    lane_pos = lax.broadcasted_iota(jnp.int32, (1, chunk), 1)
    col_iota = lax.broadcasted_iota(jnp.int32, (chunk, vocab), 1)
    diag = (lax.broadcasted_iota(jnp.int32, (chunk, chunk), 0)
            == lax.broadcasted_iota(jnp.int32, (chunk, chunk), 1))

    def body(c, acc):
        start = pl.multiple_of(c * chunk, chunk)
        x = logits_ref[pl.ds(start, chunk), :]                   # (chunk, V)
        t = targets_ref[pl.ds(c, 1), :]                          # (1, chunk)
        ok = (base + start + lane_pos) < n_rows                  # remainder mask
        t_m = jnp.where(ok, t, -1)
        return acc + _chunk_hits(x, t_m, col_iota, diag, vocab)

    hits = lax.fori_loop(0, n_full, body, jnp.int32(0))

    if rem:  # trace-time branch: only for a single ragged block (N % chunk != 0)
        start = n_full * chunk
        x = logits_ref[pl.ds(start, rem), :]                     # (rem, V)
        t = targets_ref[pl.ds(n_full, 1), :]                     # (1, chunk)
        ok = (base + start + lane_pos) < n_rows
        t_m = jnp.where(ok, t, -1)
        col_iota_r = lax.broadcasted_iota(jnp.int32, (rem, vocab), 1)
        diag_r = (lax.broadcasted_iota(jnp.int32, (rem, chunk), 0)
                  == lax.broadcasted_iota(jnp.int32, (rem, chunk), 1))
        hits = hits + _chunk_hits(x, t_m, col_iota_r, diag_r, vocab)

    out_ref[0, 0] = hits


def accuracy_3d(logits, targets, *, block_bytes=4 * 1024 * 1024, chunk=256):
    """correct = sum(argmax(logits, -1) == targets) as an int32 scalar.

    logits : float array [..., V] (any float dtype; streamed in native dtype)
    targets: int array   [...]    (same leading dims as logits)
    """
    vocab = logits.shape[-1]
    logits2d = logits.reshape(-1, vocab)                 # native dtype, no cast
    n_rows = logits2d.shape[0]
    itemsize = jnp.dtype(logits2d.dtype).itemsize

    # Logits row tile: ~block_bytes per pipeline buffer (double-buffered by the
    # BlockSpec), a multiple of `chunk` so the inner loop has no remainder.
    row_tile = block_bytes // (vocab * itemsize)
    row_tile = int(max(chunk, min(row_tile, 4096)))
    row_tile = (row_tile // chunk) * chunk
    if n_rows <= row_tile:
        row_tile = n_rows                                # single full-dim block
    num_blocks = -(-n_rows // row_tile)
    chunk_eff = min(chunk, row_tile)

    # Targets packed lane-major: original row r -> element [r // chunk, r % chunk].
    # ~4 B/row of HBM traffic instead of the 512 B/row an (N, 1) i32 layout costs.
    tgt_rows_per_block = -(-row_tile // chunk_eff)
    total_tgt_rows = num_blocks * tgt_rows_per_block
    t_flat = targets.reshape(-1).astype(jnp.int32)
    pad = total_tgt_rows * chunk_eff - n_rows
    t2d = jnp.pad(t_flat, (0, pad)).reshape(total_tgt_rows, chunk_eff)

    cost = pl.CostEstimate(
        flops=6 * n_rows * vocab,
        transcendentals=0,
        bytes_accessed=(n_rows * vocab * itemsize
                        + total_tgt_rows * chunk_eff * 4
                        + num_blocks * 4),
    )

    partials = pl.pallas_call(
        functools.partial(_accuracy_kernel, n_rows=n_rows, chunk=chunk_eff),
        out_shape=jax.ShapeDtypeStruct((num_blocks, 1), jnp.int32),
        grid_spec=pltpu.PrefetchScalarGridSpec(
            num_scalar_prefetch=0,
            grid=(num_blocks,),
            in_specs=[
                pl.BlockSpec((row_tile, vocab), lambda i: (i, 0)),
                pl.BlockSpec((tgt_rows_per_block, chunk_eff), lambda i: (i, 0)),
            ],
            out_specs=pl.BlockSpec(
                (1, 1), lambda i: (i, 0), memory_space=pltpu.SMEM
            ),
        ),
        compiler_params=pltpu.CompilerParams(
            dimension_semantics=("parallel",),   # no carried state -> megacore OK
            vmem_limit_bytes=32 * 1024 * 1024,
        ),
        cost_estimate=cost,
    )(logits2d, t2d)

    # reduce_by_batch_3d: all-reduce over input/weight parallel groups.
    # TODO(synk): single-device script -> world size 1, so the all-reduce is identity.
    return jnp.sum(partials)


if __name__ == "__main__":
    key = jax.random.PRNGKey(0)
    k1, k2, k3, k4, k5, k6 = jax.random.split(key, 6)

    def ref_count(logits, targets):
        return jnp.sum(
            jnp.argmax(logits, axis=-1).astype(jnp.int32)
            == targets.astype(jnp.int32)
        )

    # 1) Small shape consistent with the module (batch=2, seq=8, classes=128),
    #    bf16 logits streamed in native dtype.
    logits1 = jax.random.normal(k1, (2, 8, 128), dtype=jnp.float32).astype(jnp.bfloat16)
    targets1 = jax.random.randint(k2, (2, 8), 0, 128, dtype=jnp.int32)

    # 2) Ragged row count (N = 15), f32 logits, single full-dim block.
    logits2 = jax.random.normal(k3, (3, 5, 256), dtype=jnp.float32)
    targets2 = jax.random.randint(k4, (3, 5), 0, 256, dtype=jnp.int32)

    # 3) Multi-block grid with a partial last tile (N = 10000, V = 512, bf16).
    logits3 = jax.random.normal(k5, (4, 2500, 512), dtype=jnp.float32).astype(jnp.bfloat16)
    targets3 = jax.random.randint(k6, (4, 2500), 0, 512, dtype=jnp.int32)

    for logits, targets in [(logits1, targets1), (logits2, targets2), (logits3, targets3)]:
        correct = jax.block_until_ready(accuracy_3d(logits, targets))
        ref = jax.block_until_ready(ref_count(logits, targets))
        assert int(correct) == int(ref), (logits.shape, int(correct), int(ref))

    print("KERNEL_OK")
</pallas_src>

<mosaic_0001>
module attributes {stable_mosaic.version = 11 : i64} {
  func.func @_accuracy_kernel(%arg0: i32, %arg1: memref<16x128xbf16, #tpu.memory_space<vmem>>, %arg2: memref<1x16xi32, #tpu.memory_space<vmem>>, %arg3: memref<1x1xi32, #tpu.memory_space<smem>>) attributes {dimension_semantics = [#tpu.dimension_semantics<parallel>], iteration_bounds = array<i64: 1>, scalar_prefetch = 0 : i64, scratch_operands = 0 : i64, tpu.core_type = #tpu.core_type<tc>, window_params = [{transform_indices = @transform_0, window_bounds = array<i64: 16, 128>}, {transform_indices = @transform_1, window_bounds = array<i64: 1, 16>}, {transform_indices = @transform_2, window_bounds = array<i64: 1, 1>}]} {
    %c16_i32 = arith.constant 16 : i32
    %0 = arith.muli %arg0, %c16_i32 : i32
    %1 = tpu.iota {dimensions = array<i32: 1>} : vector<1x16xi32>
    %2 = tpu.iota {dimensions = array<i32: 1>} : vector<16x128xi32>
    %3 = tpu.iota {dimensions = array<i32: 0>} : vector<16x16xi32>
    %4 = tpu.iota {dimensions = array<i32: 1>} : vector<16x16xi32>
    %5 = arith.cmpi eq, %3, %4 : vector<16x16xi32>
    %c0_i32 = arith.constant 0 : i32
    %c0_i32_0 = arith.constant 0 : i32
    %c16_i32_1 = arith.constant 16 : i32
    %6 = arith.muli %c0_i32_0, %c16_i32_1 : i32
    %7 = tpu.assume_multiple %6, 16 : i32
    %8 = arith.index_cast %7 : i32 to index
    %c0 = arith.constant 0 : index
    %9 = vector.load %arg1[%8, %c0] : memref<16x128xbf16, #tpu.memory_space<vmem>>, vector<16x128xbf16>
    %10 = arith.index_cast %c0_i32_0 : i32 to index
    %c0_2 = arith.constant 0 : index
    %11 = vector.load %arg2[%10, %c0_2] : memref<1x16xi32, #tpu.memory_space<vmem>>, vector<1x16xi32>
    %12 = arith.addi %0, %7 : i32
    %13 = vector.broadcast %12 : i32 to vector<1x16xi32>
    %14 = arith.addi %13, %1 : vector<1x16xi32>
    %c16_i32_3 = arith.constant 16 : i32
    %15 = vector.broadcast %c16_i32_3 : i32 to vector<1x16xi32>
    %16 = arith.cmpi slt, %14, %15 : vector<1x16xi32>
    %c-1_i32 = arith.constant -1 : i32
    %17 = vector.broadcast %c-1_i32 : i32 to vector<1x16xi32>
    %18 = arith.select %16, %11, %17 : vector<1x16xi1>, vector<1x16xi32>
    %cst = arith.constant dense<0xFF80> : vector<16xbf16>
    %19 = vector.multi_reduction <maximumf>, %9, %cst [1] : vector<16x128xbf16> to vector<16xbf16>
    %20 = vector.shape_cast %19 : vector<16xbf16> to vector<16x1xbf16>
    %21 = vector.broadcast %20 : vector<16x1xbf16> to vector<16x128xbf16>
    %22 = arith.cmpf oeq, %9, %21 : vector<16x128xbf16>
    %c128_i32 = arith.constant 128 : i32
    %23 = vector.broadcast %c128_i32 : i32 to vector<16x128xi32>
    %24 = arith.select %22, %2, %23 : vector<16x128xi1>, vector<16x128xi32>
    %cst_4 = arith.constant dense<2147483647> : vector<16xi32>
    %25 = vector.multi_reduction <minsi>, %24, %cst_4 [1] : vector<16x128xi32> to vector<16xi32>
    %26 = vector.shape_cast %25 : vector<16xi32> to vector<16x1xi32>
    %27 = vector.broadcast %26 : vector<16x1xi32> to vector<16x16xi32>
    %28 = vector.broadcast %18 : vector<1x16xi32> to vector<16x16xi32>
    %29 = arith.cmpi eq, %27, %28 : vector<16x16xi32>
    %30 = arith.andi %29, %5 : vector<16x16xi1>
    %c1_i32 = arith.constant 1 : i32
    %c0_i32_5 = arith.constant 0 : i32
    %31 = vector.broadcast %c1_i32 : i32 to vector<16x16xi32>
    %32 = vector.broadcast %c0_i32_5 : i32 to vector<16x16xi32>
    %33 = arith.select %30, %31, %32 : vector<16x16xi1>, vector<16x16xi32>
    %34 = vector.shape_cast %33 : vector<16x16xi32> to vector<1x16x16xi32>
    %cst_6 = arith.constant dense<0> : vector<1xi32>
    %35 = vector.multi_reduction <add>, %34, %cst_6 [1, 2] : vector<1x16x16xi32> to vector<1xi32>
    %36 = vector.shape_cast %35 : vector<1xi32> to vector<1x1x1xi32>
    %37 = vector.extract %36[0, 0, 0] : i32 from vector<1x1x1xi32>
    %38 = arith.addi %c0_i32, %37 : i32
    %c1_i32_7 = arith.constant 1 : i32
    %c0_8 = arith.constant 0 : index
    %c0_9 = arith.constant 0 : index
    %39 = memref.load %arg3[%c0_8, %c0_9] : memref<1x1xi32, #tpu.memory_space<smem>>
    memref.store %38, %arg3[%c0_8, %c0_9] : memref<1x1xi32, #tpu.memory_space<smem>>
    return
  }
  func.func @transform_0(%arg0: i32) -> (i32, i32) {
    %c0_i32 = arith.constant 0 : i32
    %c0_i32_0 = arith.constant 0 : i32
    return %arg0, %c0_i32 : i32, i32
  }
  func.func @transform_1(%arg0: i32) -> (i32, i32) {
    %c0_i32 = arith.constant 0 : i32
    %c0_i32_0 = arith.constant 0 : i32
    return %arg0, %c0_i32 : i32, i32
  }
  func.func @transform_2(%arg0: i32) -> (i32, i32) {
    %c0_i32 = arith.constant 0 : i32
    %c0_i32_0 = arith.constant 0 : i32
    return %arg0, %c0_i32 : i32, i32
  }
}

</mosaic_0001>

<llo_original>
// kernel: tpu_custom_call.1
$region0: #{tpu_custom_call.1}
  #allocation0 [shape = 'u32[]', space=smem, size = 0x4, offset = 0x4, fixed_abs, tag = 'smem constant byte address 0x4 - core index']
  #allocation1 [shape = 'u32[72,128]{1,0:T(1,128)}', space=vmem, size = 0x9000, scoped, tag = 'internal scratch']
  %s0 = inlined_call_operand.hbm [shape: bf16[16,128], index: 0, kind: input, shape index: {}]
  %s1 = inlined_call_operand.hbm [shape: s32[1,16], index: 1, kind: input, shape index: {}]
  %s2 = inlined_call_operand.hbm [shape: s32[1,1], index: 2, kind: output, shape index: {}]
  %s3 = sld [smem:[#allocation0]]
  $region26: #{tpu_custom_call.1} parent=0
    _
  %s5 = ssub.s32 1, %s3
  %s6 = scalar_select 0, %s5, %s3
  $region1: #{tpu_custom_call.1} parent=0
    #allocation2 [shape = 'u8[4096]{0}', space=vmem, size = 0x1000, scoped, tag = 'input window, operand 0, single buffered']
    #allocation3 [shape = 's32[1]{0}', space=sflag, size = 0x4, scoped, tag = 'scoped memory for tpu_custom_call.1']
    #allocation4 [shape = 's32[1]{0}', space=sflag, size = 0x4, scoped, tag = 'scoped memory for tpu_custom_call.1']
    #allocation5 [shape = 'u8[512]{0}', space=vmem, size = 0x400, scoped, tag = 'input window, operand 1, single buffered']
    #allocation6 [shape = 's32[1]{0}', space=sflag, size = 0x4, scoped, tag = 'scoped memory for tpu_custom_call.1']
    #allocation7 [shape = 'u8[512]{0}', space=smem, size = 0x200, scoped, tag = 'output window, operand 0, single buffered']
    %7 = vsyncpa [#allocation3], 0
    %8 = vsyncpa [#allocation6], 0
    %9 = vsyncpa [#allocation4], 0
    // Predicated region
    $region2: #{tpu_custom_call.1} parent=1 // pred_check
      _
    $region3: #{tpu_custom_call.1} parent=1 // pred_check_branch
      %11 = sbr.rel (0) target = $region5
    $region4: #{tpu_custom_call.1} parent=1 // pred_region
      %13 = vsyncadd [#allocation3], 0
      %s14 = sshll.u32 %s0, 4
      %s15 = int_to_ptr.hbm [resolvable:$true] %s14
      %s16 = sshll.u32 [#allocation2], 4
      %s17 = int_to_ptr.vmem [resolvable:$true] %s16
      %22 = dma.hbm_to_vmem [thread:$0]  %s15, 128, %s17, [#allocation3], 64, 64, 4
    $region5: #{tpu_custom_call.1} parent=1 // pred_fallthru
      _
    // Predicated region
    $region6: #{tpu_custom_call.1} parent=1 // pred_check
      _
    $region7: #{tpu_custom_call.1} parent=1 // pred_check_branch
      %24 = sbr.rel (0) target = $region9
    $region8: #{tpu_custom_call.1} parent=1 // pred_region
      %26 = vsyncadd [#allocation6], 0
      %s28 = sshll.u32 %s1, 4
      %s29 = int_to_ptr.hbm [resolvable:$true] %s28
      %s30 = sshll.u32 [#allocation5], 4
      %s31 = int_to_ptr.vmem [resolvable:$true] %s30
      %33 = dma.hbm_to_vmem [thread:$0]  %s29, 16, %s31, [#allocation6]
    $region9: #{tpu_custom_call.1} parent=1 // pred_fallthru
      _
    // Predicated region
    $region10: #{tpu_custom_call.1} parent=1 // pred_check
      _
    $region11: #{tpu_custom_call.1} parent=1 // pred_check_branch
      %35 = sbr.rel (0) target = $region13
    $region12: #{tpu_custom_call.1} parent=1 // pred_region
      %37 = dma.done [#allocation3], 128
    $region13: #{tpu_custom_call.1} parent=1 // pred_fallthru
      _
    // Predicated region
    $region14: #{tpu_custom_call.1} parent=1 // pred_check
      _
    $region15: #{tpu_custom_call.1} parent=1 // pred_check_branch
      %39 = sbr.rel (0) target = $region17
    $region16: #{tpu_custom_call.1} parent=1 // pred_region
      %41 = dma.done [#allocation6], 16
    $region17: #{tpu_custom_call.1} parent=1 // pred_fallthru
      _
    %s42 = smul.u32 0, 16
    %v43 = vlaneseq
    %v44 = vand.u32 %v43, 127
    %v45 = vlaneseq
    %v46 = vshrl.u32 %v45, 7
    %v47 = vadd.s32 %v46, 8
    %vm48 = vcmp.eq.s32.totalorder %v46, %v44
    %vm49 = vcmp.eq.s32.totalorder %v47, %v44
    %v50 = vld [vmem:[#allocation2] sm:$0xf]
    %v51 = vld [vmem:[#allocation2 + $0x4] sm:$0xf]
    %v52 = vld [vmem:[#allocation5] sm:$0x1]
    %s53 = sadd.s32 %s42, 0
    %v54 = vstv %s53
    %v55 = vadd.s32 %v54, %v44
    %vm56 = vcmp.lt.s32.totalorder %v55, 16
    %v57 = vsel %vm56, %v52, 4294967295
    %v58 = vunpack.c.l.bf16 %v50
    %v59 = vunpack.c.l.bf16 %v51
    %60 = vmax.xlane.f32.xlu0 %v58
    %v61 = vpop.xlane.xlu0 %60
    %62 = vmax.xlane.f32.xlu0 %v59
    %v63 = vpop.xlane.xlu0 %62
    %v64 = vpack.c.bf16 %v61, %v61
    %v65 = vpack.c.bf16 %v63, %v63
    %v66 = vunpack.c.l.bf16 %v64
    %v67 = vunpack.c.l.bf16 %v65
    %vm68 = vcmp.eq.f32.partialorder %v58, %v66
    %vm69 = vcmp.eq.f32.partialorder %v59, %v67
    %v70 = vsel %vm68, %v44, 128
    %v71 = vsel %vm69, %v44, 128
    %v72 = vand.u32 %v70, 65535
    %v73 = vshra.s32 %v70, 16
    %v74 = vcvt.s32.f32 %v72
    %v75 = vcvt.s32.f32 %v73
    %76 = vmin.xlane.f32.xlu0 %v75
    %v77 = vpop.xlane.xlu0 %76
    %vm78 = vcmp.eq.f32.partialorder %v75, %v77
    %v79 = vsel %vm78, %v74, inf
    %80 = vmin.xlane.f32.xlu0 %v79
    %v81 = vpop.xlane.xlu0 %80
    %v82 = vcvt.f32.s32 %v81
    %v83 = vcvt.f32.s32 %v77
    %v84 = vshll.u32 %v83, 16
    %v85 = vadd.s32 %v84, %v82
    %v86 = vand.u32 %v71, 65535
    %v87 = vshra.s32 %v71, 16
    %v88 = vcvt.s32.f32 %v86
    %v89 = vcvt.s32.f32 %v87
    %90 = vmin.xlane.f32.xlu0 %v89
    %v91 = vpop.xlane.xlu0 %90
    %vm92 = vcmp.eq.f32.partialorder %v89, %v91
    %v93 = vsel %vm92, %v88, inf
    %94 = vmin.xlane.f32.xlu0 %v93
    %v95 = vpop.xlane.xlu0 %94
    %v96 = vcvt.f32.s32 %v95
    %v97 = vcvt.f32.s32 %v91
    %v98 = vshll.u32 %v97, 16
    %v99 = vadd.s32 %v98, %v96
    %v100 = vperm.slane %v57, 0
    %vm101 = vcmp.eq.s32.totalorder %v85, %v100
    %vm102 = vcmp.eq.s32.totalorder %v99, %v100
    %vm103 = vmand %vm101, %vm48
    %vm104 = vmand %vm102, %vm49
    %v105 = vsel %vm103, 1, 0
    %v106 = vsel %vm104, 1, 0
    %vm107 = vcmask 130048
    %v108 = vsel %vm107, %v105, 0
    %v109 = vsel %vm107, %v106, 0
    %v110 = vadd.s32 %v108, %v109
    %v111 = vand.u32 %v110, 65535
    %v112 = vshrl.u32 %v110, 16
    %v113 = vcvt.s32.f32 %v111
    %v114 = vcvt.s32.f32 %v112
    %115 = vadd.xlane.f32.xlu0 %v113
    %v116 = vpop.xlane.xlu0 %115
    %117 = vadd.xlane.f32.xlu0 %v114
    %v118 = vpop.xlane.xlu0 %117
    %v119 = vcvt.f32.s32 %v116
    %v120 = vcvt.f32.s32 %v118
    %v121 = vshll.u32 %v120, 16
    %v122 = vadd.s32 %v121, %v119
    %v123 = vrot.slane %v122, 4
    %v124 = vadd.s32 %v122, %v123
    %v125 = vrot.slane %v124, 2
    %v126 = vadd.s32 %v124, %v125
    %v127 = vrot.slane %v126, 1
    %v128 = vadd.s32 %v126, %v127
    %s129 = vtos %v128
    %s130 = scalar_lea.smem [#allocation7], 0
    %131 = sst [smem:[%s130]] %s129
    // Predicated region
    $region18: #{tpu_custom_call.1} parent=1 // pred_check
      _
    $region19: #{tpu_custom_call.1} parent=1 // pred_check_branch
      %133 = sbr.rel (0) target = $region21
    $region20: #{tpu_custom_call.1} parent=1 // pred_region
      %135 = vsyncadd [#allocation4], 0
      %s137 = sshll.u32 %s2, 4
      %s138 = int_to_ptr.hbm [resolvable:$true] %s137
      %140 = dma.smem_to_hbm [#allocation7], 16, %s138, [#allocation4]
    $region21: #{tpu_custom_call.1} parent=1 // pred_fallthru
      _
    // Predicated region
    $region22: #{tpu_custom_call.1} parent=1 // pred_check
      _
    $region23: #{tpu_custom_call.1} parent=1 // pred_check_branch
      %142 = sbr.rel (0) target = $region25
    $region24: #{tpu_custom_call.1} parent=1 // pred_region
      %144 = dma.done [#allocation4], 16
    $region25: #{tpu_custom_call.1} parent=1 // pred_fallthru
      _
    %145 = sfence
    %146 = vsyncpa [#allocation3], 1
    %147 = vsyncpa [#allocation6], 1
    %148 = vsyncpa [#allocation4], 1

</llo_original>
